<compile_context>
chip_gen: v6e
topology: v6e:2x2x1
jax: 0.10.0
libtpu: 0.0.40
codegen_flags: <defaults>
</compile_context>

<pallas_src>
import numpy as np

import jax
import jax.numpy as jnp
from jax.experimental import pallas as pl
from jax.experimental.pallas import tpu as pltpu

EPS = 1e-6                                       # module adds eps (not eps^2)
KW = 5
_K1D = (0.05, 0.25, 0.4, 0.25, 0.05)             # separable gaussian taps
GAUSS_W = [[a * b for b in _K1D] for a in _K1D]  # full 5x5 weights (reference)


# --------------------- trace-time constants (numpy) ---------------------

def _band_np(n):
    """(n, n) band matrix M with M[i, clamp(i+t)] += k[t]:  M @ z convolves
    the leading axis of z with the 5-tap gaussian under replicate padding."""
    m = np.zeros((n, n), np.float32)
    idx = np.arange(n)
    for t, w in zip(range(-(KW // 2), KW // 2 + 1), _K1D):
        np.add.at(m, (idx, np.clip(idx + t, 0, n - 1)), np.float32(w))
    return m


def _mask4_np(h, w):
    """Even-grid multiplier: 4.0 at (even row, even col), 0.0 elsewhere."""
    m = np.zeros((h, w), np.float32)
    m[::2, ::2] = 4.0
    return m


# --------------------------- fused Pallas kernel ---------------------------

def _edge_loss_kernel(bh_ref, bwt_ref, m4_ref, x_ref, y_ref, err_ref):
    """One grid step: bb images -> elementwise Charbonnier partial sums.

    bh_ref : (H, H)  vertical band matrix   (row conv  = bh @ z)
    bwt_ref: (W, W)  horizontal band matrix, pre-transposed (col conv = z @ bwt)
    m4_ref : (H, W)  even-grid multiplier {4.0, 0.0}
    x_ref, y_ref: (bb, H, W) image blocks
    err_ref: (1, H, W) output block: sum_i sqrt((lap(x_i) - lap(y_i))^2 + eps)
    """
    bh = bh_ref[...]
    bwt = bwt_ref[...]
    m4 = m4_ref[...]
    err_ref[...] = jnp.zeros_like(err_ref)

    def conv_gauss(z):                       # 5x5 gaussian, replicate pad (MXU)
        h = jnp.dot(z, bwt, preferred_element_type=jnp.float32)
        return jnp.dot(bh, h, preferred_element_type=jnp.float32)

    def lap(z):                              # z - conv(mask_even(conv(z)) * 4)
        return z - conv_gauss(m4 * conv_gauss(z))

    @pl.loop(0, x_ref.shape[0])              # strip loop: one image at a time
    def _(i):
        d = lap(x_ref[i].astype(jnp.float32)) - lap(y_ref[i].astype(jnp.float32))
        err_ref[0] = err_ref[0] + jnp.sqrt(d * d + EPS)


# ------------------------------- wrapper -------------------------------

def _vmem_limit_bytes():
    """Chip-aware VMEM limit: ~70% of physical, capped below 128 MiB."""
    cap = 64 * 1024 * 1024                   # conservative default (v7x VMEM/TC)
    try:
        cap = int(pltpu.get_tpu_info().vmem_capacity_bytes)
    except Exception:
        pass
    return int(min(cap * 0.7, 100 * 1024 * 1024))


def _pick_block_b(B, H, W, vmem_budget):
    """Largest divisor of B whose per-step footprint fits the budget.
    Prefer an even number of grid steps >= 2 so a v7x megacore split of the
    'parallel' axis stays balanced (cheap on single-TC chips).
    Note: a prime B degrades to bb=1 (correct, just more grid steps)."""
    img = H * W * 4                                        # one f32 image
    fixed = (2 * 4 * (H * H + W * W + H * W)               # const blocks (dbl-buffered)
             + 2 * img                                     # output block (dbl-buffered)
             + 10 * img)                                   # per-image live temps
    per_bb = 4 * img                                       # x,y blocks, double-buffered
    avail = max(vmem_budget - fixed, per_bb)
    cap = max(1, min(B, avail // per_bb))

    divs = [d for d in range(1, B + 1) if B % d == 0 and d <= cap]
    even_g = [d for d in divs if (B // d) >= 2 and (B // d) % 2 == 0]
    multi_g = [d for d in divs if (B // d) >= 2]
    if even_g:
        bb = max(even_g)
    elif multi_g:
        bb = max(multi_g)
    else:
        bb = max(divs) if divs else 1
    return bb, B // bb


@jax.jit
def edge_loss(x, y):
    """EdgeLoss.forward(x, y) -> scalar Charbonnier loss between laplacians."""
    N, C, H, W = x.shape
    B = N * C
    xb = x.reshape(B, H, W)
    yb = y.reshape(B, H, W)

    # Trace-time constants: band matrices (replicate pad folded in) + mask.
    bh = jnp.asarray(_band_np(H))            # (H, H): row conv is bh @ z
    bwt = jnp.asarray(_band_np(W).T)         # (W, W): col conv is z @ bwt
    m4 = jnp.asarray(_mask4_np(H, W))        # (H, W): even-grid * 4 multiplier

    vmem_limit = _vmem_limit_bytes()
    bb, G = _pick_block_b(B, H, W, vmem_limit // 2)

    partials = pl.pallas_call(
        _edge_loss_kernel,
        out_shape=jax.ShapeDtypeStruct((G, H, W), jnp.float32),
        grid_spec=pltpu.PrefetchScalarGridSpec(
            num_scalar_prefetch=0,
            grid=(G,),
            in_specs=[
                pl.BlockSpec((H, H), lambda g: (0, 0)),          # bh  (constant)
                pl.BlockSpec((W, W), lambda g: (0, 0)),          # bwt (constant)
                pl.BlockSpec((H, W), lambda g: (0, 0)),          # m4  (constant)
                pl.BlockSpec((bb, H, W), lambda g: (g, 0, 0)),   # x block
                pl.BlockSpec((bb, H, W), lambda g: (g, 0, 0)),   # y block
            ],
            out_specs=pl.BlockSpec((1, H, W), lambda g: (g, 0, 0)),
        ),
        compiler_params=pltpu.CompilerParams(
            dimension_semantics=("parallel",),   # megacore split on v7x
            vmem_limit_bytes=vmem_limit,
        ),
    )(bh, bwt, m4, xb, yb)

    # Sum of elementwise partials / true element count (not a mean of means).
    return jnp.sum(partials) / (B * H * W)


# ----------------- pure-JAX reference (for the self-check) -----------------

def _ref_edge_loss(x, y):
    k = jnp.asarray(GAUSS_W, jnp.float32)

    def conv_gauss(img):
        H, W = img.shape[2], img.shape[3]
        p = jnp.pad(img, ((0, 0), (0, 0), (2, 2), (2, 2)), mode="edge")
        out = jnp.zeros(img.shape, jnp.float32)
        for i in range(KW):
            for j in range(KW):
                out = out + k[i, j] * p[:, :, i:i + H, j:j + W]
        return out

    def lap(img):
        f = conv_gauss(img)
        nf = jnp.zeros_like(f).at[:, :, ::2, ::2].set(4.0 * f[:, :, ::2, ::2])
        return img - conv_gauss(nf)

    d = lap(x.astype(jnp.float32)) - lap(y.astype(jnp.float32))
    return jnp.mean(jnp.sqrt(d * d + EPS))


if __name__ == "__main__":
    key = jax.random.PRNGKey(0)
    kx, ky = jax.random.split(key)
    # EdgeLoss' gaussian kernel is repeated 3x with groups=3 -> inputs have C=3.
    x = jax.random.normal(kx, (2, 3, 32, 32), dtype=jnp.float32)
    y = jax.random.normal(ky, (2, 3, 32, 32), dtype=jnp.float32)

    loss = edge_loss(x, y)
    jax.block_until_ready(loss)

    ref = _ref_edge_loss(x, y)
    assert loss.shape == () and bool(jnp.isfinite(loss))
    assert bool(jnp.allclose(loss, ref, rtol=1e-3, atol=1e-5)), (float(loss), float(ref))
    print("KERNEL_OK")
</pallas_src>

<mosaic_0001>
module attributes {stable_mosaic.version = 11 : i64} {
  func.func @_edge_loss_kernel(%arg0: i32, %arg1: memref<32x32xf32, #tpu.memory_space<vmem>>, %arg2: memref<32x32xf32, #tpu.memory_space<vmem>>, %arg3: memref<32x32xf32, #tpu.memory_space<vmem>>, %arg4: memref<3x32x32xf32, #tpu.memory_space<vmem>>, %arg5: memref<3x32x32xf32, #tpu.memory_space<vmem>>, %arg6: memref<1x32x32xf32, #tpu.memory_space<vmem>>) attributes {dimension_semantics = [#tpu.dimension_semantics<parallel>], iteration_bounds = array<i64: 2>, scalar_prefetch = 0 : i64, scratch_operands = 0 : i64, tpu.core_type = #tpu.core_type<tc>, window_params = [{pipeline_mode = #tpu.pipeline_mode<synchronous>, transform_indices = @transform_0, window_bounds = array<i64: 32, 32>}, {pipeline_mode = #tpu.pipeline_mode<synchronous>, transform_indices = @transform_1, window_bounds = array<i64: 32, 32>}, {pipeline_mode = #tpu.pipeline_mode<synchronous>, transform_indices = @transform_2, window_bounds = array<i64: 32, 32>}, {transform_indices = @transform_3, window_bounds = array<i64: 3, 32, 32>}, {transform_indices = @transform_4, window_bounds = array<i64: 3, 32, 32>}, {transform_indices = @transform_5, window_bounds = array<i64: 1, 32, 32>}]} {
    %c0 = arith.constant 0 : index
    %c0_0 = arith.constant 0 : index
    %0 = vector.load %arg1[%c0, %c0_0] : memref<32x32xf32, #tpu.memory_space<vmem>>, vector<32x32xf32>
    %c0_1 = arith.constant 0 : index
    %c0_2 = arith.constant 0 : index
    %1 = vector.load %arg2[%c0_1, %c0_2] : memref<32x32xf32, #tpu.memory_space<vmem>>, vector<32x32xf32>
    %c0_3 = arith.constant 0 : index
    %c0_4 = arith.constant 0 : index
    %2 = vector.load %arg3[%c0_3, %c0_4] : memref<32x32xf32, #tpu.memory_space<vmem>>, vector<32x32xf32>
    %cst = arith.constant 0.000000e+00 : f32
    %3 = vector.broadcast %cst : f32 to vector<1x32x32xf32>
    %c0_5 = arith.constant 0 : index
    %c0_6 = arith.constant 0 : index
    %c0_7 = arith.constant 0 : index
    %4 = vector.load %arg6[%c0_5, %c0_6, %c0_7] : memref<1x32x32xf32, #tpu.memory_space<vmem>>, vector<1x32x32xf32>
    tpu.vector_store %arg6[%c0_5, %c0_6, %c0_7], %3 {strides = array<i32>} : memref<1x32x32xf32, #tpu.memory_space<vmem>>, vector<1x32x32xf32>,
    %c0_i32 = arith.constant 0 : i32
    %c3_i32 = arith.constant 3 : i32
    %5 = arith.addi %c0_i32, %c3_i32 : i32
    %c1_i32 = arith.constant 1 : i32
    scf.for %arg7 = %c0_i32 to %5 step %c1_i32  : i32 {
      %c1_i32_9 = arith.constant 1 : i32
      %6 = arith.muli %arg7, %c1_i32_9 : i32
      %c0_i32_10 = arith.constant 0 : i32
      %7 = arith.addi %c0_i32_10, %6 : i32
      %8 = arith.index_cast %7 : i32 to index
      %c0_11 = arith.constant 0 : index
      %c0_12 = arith.constant 0 : index
      %9 = vector.load %arg4[%8, %c0_11, %c0_12] : memref<3x32x32xf32, #tpu.memory_space<vmem>>, vector<1x32x32xf32>
      %10 = vector.shape_cast %9 : vector<1x32x32xf32> to vector<32x32xf32>
      %cst_13 = arith.constant dense<0.000000e+00> : vector<32x32xf32>
      %11 = tpu.matmul %10, %1, %cst_13 {dimension_numbers = #tpu.dot_dimension_numbers<[1], [0], [0], [1], [0, 0, 1, 1], [], []>} : vector<32x32xf32>, vector<32x32xf32>, vector<32x32xf32> -> vector<32x32xf32>
      %cst_14 = arith.constant dense<0.000000e+00> : vector<32x32xf32>
      %12 = tpu.matmul %0, %11, %cst_14 {dimension_numbers = #tpu.dot_dimension_numbers<[1], [0], [0], [1], [0, 0, 1, 1], [], []>} : vector<32x32xf32>, vector<32x32xf32>, vector<32x32xf32> -> vector<32x32xf32>
      %13 = arith.mulf %2, %12 : vector<32x32xf32>
      %cst_15 = arith.constant dense<0.000000e+00> : vector<32x32xf32>
      %14 = tpu.matmul %13, %1, %cst_15 {dimension_numbers = #tpu.dot_dimension_numbers<[1], [0], [0], [1], [0, 0, 1, 1], [], []>} : vector<32x32xf32>, vector<32x32xf32>, vector<32x32xf32> -> vector<32x32xf32>
      %cst_16 = arith.constant dense<0.000000e+00> : vector<32x32xf32>
      %15 = tpu.matmul %0, %14, %cst_16 {dimension_numbers = #tpu.dot_dimension_numbers<[1], [0], [0], [1], [0, 0, 1, 1], [], []>} : vector<32x32xf32>, vector<32x32xf32>, vector<32x32xf32> -> vector<32x32xf32>
      %16 = arith.subf %10, %15 : vector<32x32xf32>
      %17 = arith.index_cast %7 : i32 to index
      %c0_17 = arith.constant 0 : index
      %c0_18 = arith.constant 0 : index
      %18 = vector.load %arg5[%17, %c0_17, %c0_18] : memref<3x32x32xf32, #tpu.memory_space<vmem>>, vector<1x32x32xf32>
      %19 = vector.shape_cast %18 : vector<1x32x32xf32> to vector<32x32xf32>
      %cst_19 = arith.constant dense<0.000000e+00> : vector<32x32xf32>
      %20 = tpu.matmul %19, %1, %cst_19 {dimension_numbers = #tpu.dot_dimension_numbers<[1], [0], [0], [1], [0, 0, 1, 1], [], []>} : vector<32x32xf32>, vector<32x32xf32>, vector<32x32xf32> -> vector<32x32xf32>
      %cst_20 = arith.constant dense<0.000000e+00> : vector<32x32xf32>
      %21 = tpu.matmul %0, %20, %cst_20 {dimension_numbers = #tpu.dot_dimension_numbers<[1], [0], [0], [1], [0, 0, 1, 1], [], []>} : vector<32x32xf32>, vector<32x32xf32>, vector<32x32xf32> -> vector<32x32xf32>
      %22 = arith.mulf %2, %21 : vector<32x32xf32>
      %cst_21 = arith.constant dense<0.000000e+00> : vector<32x32xf32>
      %23 = tpu.matmul %22, %1, %cst_21 {dimension_numbers = #tpu.dot_dimension_numbers<[1], [0], [0], [1], [0, 0, 1, 1], [], []>} : vector<32x32xf32>, vector<32x32xf32>, vector<32x32xf32> -> vector<32x32xf32>
      %cst_22 = arith.constant dense<0.000000e+00> : vector<32x32xf32>
      %24 = tpu.matmul %0, %23, %cst_22 {dimension_numbers = #tpu.dot_dimension_numbers<[1], [0], [0], [1], [0, 0, 1, 1], [], []>} : vector<32x32xf32>, vector<32x32xf32>, vector<32x32xf32> -> vector<32x32xf32>
      %25 = arith.subf %19, %24 : vector<32x32xf32>
      %26 = arith.subf %16, %25 : vector<32x32xf32>
      %c0_23 = arith.constant 0 : index
      %c0_24 = arith.constant 0 : index
      %c0_25 = arith.constant 0 : index
      %27 = vector.load %arg6[%c0_23, %c0_24, %c0_25] : memref<1x32x32xf32, #tpu.memory_space<vmem>>, vector<1x32x32xf32>
      %28 = vector.shape_cast %27 : vector<1x32x32xf32> to vector<32x32xf32>
      %29 = arith.mulf %26, %26 : vector<32x32xf32>
      %cst_26 = arith.constant 9.99999997E-7 : f32
      %30 = vector.broadcast %cst_26 : f32 to vector<32x32xf32>
      %31 = arith.addf %29, %30 : vector<32x32xf32>
      %32 = math.sqrt %31 : vector<32x32xf32>
      %33 = arith.addf %28, %32 : vector<32x32xf32>
      %c0_27 = arith.constant 0 : index
      %c0_28 = arith.constant 0 : index
      %c0_29 = arith.constant 0 : index
      %34 = vector.load %arg6[%c0_27, %c0_28, %c0_29] : memref<1x32x32xf32, #tpu.memory_space<vmem>>, vector<1x32x32xf32>
      %35 = vector.shape_cast %34 : vector<1x32x32xf32> to vector<32x32xf32>
      %36 = vector.shape_cast %33 : vector<32x32xf32> to vector<1x32x32xf32>
      tpu.vector_store %arg6[%c0_27, %c0_28, %c0_29], %36 {strides = array<i32>} : memref<1x32x32xf32, #tpu.memory_space<vmem>>, vector<1x32x32xf32>,
    }
    %c3_i32_8 = arith.constant 3 : i32
    return
  }
  func.func @transform_0(%arg0: i32) -> (i32, i32) {
    %c0_i32 = arith.constant 0 : i32
    %c0_i32_0 = arith.constant 0 : i32
    %c0_i32_1 = arith.constant 0 : i32
    return %c0_i32, %c0_i32_0 : i32, i32
  }
  func.func @transform_1(%arg0: i32) -> (i32, i32) {
    %c0_i32 = arith.constant 0 : i32
    %c0_i32_0 = arith.constant 0 : i32
    %c0_i32_1 = arith.constant 0 : i32
    return %c0_i32, %c0_i32_0 : i32, i32
  }
  func.func @transform_2(%arg0: i32) -> (i32, i32) {
    %c0_i32 = arith.constant 0 : i32
    %c0_i32_0 = arith.constant 0 : i32
    %c0_i32_1 = arith.constant 0 : i32
    return %c0_i32, %c0_i32_0 : i32, i32
  }
  func.func @transform_3(%arg0: i32) -> (i32, i32, i32) {
    %c0_i32 = arith.constant 0 : i32
    %c0_i32_0 = arith.constant 0 : i32
    %c0_i32_1 = arith.constant 0 : i32
    return %arg0, %c0_i32, %c0_i32_0 : i32, i32, i32
  }
  func.func @transform_4(%arg0: i32) -> (i32, i32, i32) {
    %c0_i32 = arith.constant 0 : i32
    %c0_i32_0 = arith.constant 0 : i32
    %c0_i32_1 = arith.constant 0 : i32
    return %arg0, %c0_i32, %c0_i32_0 : i32, i32, i32
  }
  func.func @transform_5(%arg0: i32) -> (i32, i32, i32) {
    %c0_i32 = arith.constant 0 : i32
    %c0_i32_0 = arith.constant 0 : i32
    %c0_i32_1 = arith.constant 0 : i32
    return %arg0, %c0_i32, %c0_i32_0 : i32, i32, i32
  }
}

</mosaic_0001>

<llo_original>
// kernel: edge_loss.1
$region0: #{edge_loss.1}
  #allocation0 [shape = 'u32[]', space=smem, size = 0x4, offset = 0x4, fixed_abs, tag = 'smem constant byte address 0x4 - core index']
  #allocation1 [shape = 'u32[144,128]{1,0:T(1,128)}', space=vmem, size = 0x12000, scoped, tag = 'internal scratch']
  %s0 = inlined_call_operand.hbm [shape: f32[32,32], index: 0, kind: input, shape index: {}]
  %s1 = inlined_call_operand.hbm [shape: f32[32,32], index: 1, kind: input, shape index: {}]
  %s2 = inlined_call_operand.hbm [shape: f32[32,32], index: 2, kind: input, shape index: {}]
  %s3 = inlined_call_operand.hbm [shape: f32[6,32,32], index: 3, kind: input, shape index: {}]
  %s4 = inlined_call_operand.hbm [shape: f32[6,32,32], index: 4, kind: input, shape index: {}]
  %s5 = inlined_call_operand.vmem [shape: f32[2,32,32], index: 5, kind: output, shape index: {}]
  %s6 = sld [smem:[#allocation0]]
  $region80: #{edge_loss.1} parent=0
    _
  %s8 = ssub.s32 1, %s6
  %s9 = scalar_select 0, %s8, %s6
  $region1: #{edge_loss.1} parent=0
    #allocation2 [shape = 'u8[16384]{0}', space=vmem, size = 0x4000, scoped, tag = 'input window, operand 0, single buffered']
    #allocation3 [shape = 's32[2]{0}', space=sflag, size = 0x8, scoped, tag = 'scoped memory for edge_loss.1']
    #allocation4 [shape = 'u8[16384]{0}', space=vmem, size = 0x4000, scoped, tag = 'input window, operand 1, single buffered']
    #allocation5 [shape = 's32[1]{0}', space=sflag, size = 0x4, scoped, tag = 'scoped memory for edge_loss.1']
    #allocation6 [shape = 'u8[16384]{0}', space=vmem, size = 0x4000, scoped, tag = 'input window, operand 2, single buffered']
    #allocation7 [shape = 'u8[98304]{0}', space=vmem, size = 0x18000, scoped, tag = 'input window, operand 3']
    #allocation8 [shape = 's32[2]{0}', space=sflag, size = 0x8, scoped, tag = 'scoped memory for edge_loss.1']
    #allocation9 [shape = 'u8[98304]{0}', space=vmem, size = 0x18000, scoped, tag = 'input window, operand 4']
    %10 = vsyncpa [#allocation3], 0
    %11 = vsyncpa [#allocation5], 0
    %12 = vsyncpa [#allocation8], 0
    %s13 = scalar_lea.sflag [#allocation8], 1
    %14 = vsyncpa %s13, 0
    loop: start=0, step=1, limit=4
    $region2: #{edge_loss.1} parent=1 // loop_pre_header
      _
    $region3: #{edge_loss.1} parent=1 // loop_header
      %s16 = sphi 0, %s20
      %p17 = scmp.ge.s32.totalorder %s16, 4
      %s24 = sphi 0, %s24
      %s26 = sphi 0, %s24
      %s27 = sphi 0, %s26
      %s41 = sphi 0, %s27
      %s45 = sphi 0, %s45
      %s47 = sphi 0, %s45
      %s48 = sphi 0, %s47
      %s62 = sphi 0, %s48
      %s66 = sphi 0, %s66
      %s68 = sphi 0, %s66
      %s69 = sphi 0, %s68
      %s83 = sphi 0, %s69
      %s89 = sphi 0, %s91
      %s92 = sphi 0, %s89
      %s93 = sphi 0, %s92
      %s109 = sphi 0, %s93
      %s115 = sphi 0, %s117
      %s118 = sphi 0, %s115
      %s119 = sphi 0, %s118
      %s135 = sphi 0, %s119
      %s141 = sphi 0, %s143
      %s144 = sphi 0, %s141
      %s145 = sphi 0, %s144
      %s161 = sphi 0, %s145
    $region4: #{edge_loss.1} parent=1 // loop_header_branch
      %19 = sbr.rel (%p17) target = $region8
    $region5: #{edge_loss.1} parent=1 // loop_body
      %s21 = ssub.s32 %s16, 1
      %s22 = ssub.s32 %s16, 2
      %s23 = sadd.s32 %s16, 1
      %s25 = sadd.s32 %s24, 1
      %p28 = scmp.eq.s32.totalorder %s16, 1
      %p29 = scmp.ne.s32.totalorder %s24, %s26
      %p30 = scmp.eq.s32.totalorder %s16, 0
      %p31 = por %p29, %p30
      %p32 = scmp.ne.s32.totalorder %s24, %s26
      %p33 = scmp.eq.s32.totalorder %s21, 1
      %p34 = por %p32, %p33
      %p35 = scmp.ne.s32.totalorder %s26, %s27
      %p36 = scmp.eq.s32.totalorder %s21, 0
      %p37 = por %p35, %p36
      %p38 = scmp.ne.s32.totalorder %s26, %s27
      %p39 = scmp.eq.s32.totalorder %s22, 1
      %p40 = por %p38, %p39
      %p42 = scmp.ne.s32.totalorder %s27, %s41
      %p43 = scmp.eq.s32.totalorder %s22, 0
      %p44 = por %p42, %p43
      %s46 = sadd.s32 %s45, 1
      %p49 = scmp.eq.s32.totalorder %s16, 1
      %p50 = scmp.ne.s32.totalorder %s45, %s47
      %p51 = scmp.eq.s32.totalorder %s16, 0
      %p52 = por %p50, %p51
      %p53 = scmp.ne.s32.totalorder %s45, %s47
      %p54 = scmp.eq.s32.totalorder %s21, 1
      %p55 = por %p53, %p54
      %p56 = scmp.ne.s32.totalorder %s47, %s48
      %p57 = scmp.eq.s32.totalorder %s21, 0
      %p58 = por %p56, %p57
      %p59 = scmp.ne.s32.totalorder %s47, %s48
      %p60 = scmp.eq.s32.totalorder %s22, 1
      %p61 = por %p59, %p60
      %p63 = scmp.ne.s32.totalorder %s48, %s62
      %p64 = scmp.eq.s32.totalorder %s22, 0
      %p65 = por %p63, %p64
      %s67 = sadd.s32 %s66, 1
      %p70 = scmp.eq.s32.totalorder %s16, 1
      %p71 = scmp.ne.s32.totalorder %s66, %s68
      %p72 = scmp.eq.s32.totalorder %s16, 0
      %p73 = por %p71, %p72
      %p74 = scmp.ne.s32.totalorder %s66, %s68
      %p75 = scmp.eq.s32.totalorder %s21, 1
      %p76 = por %p74, %p75
      %p77 = scmp.ne.s32.totalorder %s68, %s69
      %p78 = scmp.eq.s32.totalorder %s21, 0
      %p79 = por %p77, %p78
      %p80 = scmp.ne.s32.totalorder %s68, %s69
      %p81 = scmp.eq.s32.totalorder %s22, 1
      %p82 = por %p80, %p81
      %p84 = scmp.ne.s32.totalorder %s69, %s83
      %p85 = scmp.eq.s32.totalorder %s22, 0
      %p86 = por %p84, %p85
      %s87 = ssub.s32 %s16, %s23
      %p88 = scmp.eq.s32.totalorder %s87, 0
      %s90 = sadd.s32 %s89, 1
      %s91 = scalar_select %p88, %s89, %s90
      %p94 = pneg %p88
      %p95 = scmp.eq.s32.totalorder %s16, 1
      %p96 = por %p94, %p95
      %p97 = scmp.ne.s32.totalorder %s89, %s92
      %p98 = scmp.eq.s32.totalorder %s16, 0
      %p99 = por %p97, %p98
      %p100 = scmp.ne.s32.totalorder %s89, %s92
      %p101 = scmp.eq.s32.totalorder %s21, 1
      %p102 = por %p100, %p101
      %p103 = scmp.ne.s32.totalorder %s92, %s93
      %p104 = scmp.eq.s32.totalorder %s21, 0
      %p105 = por %p103, %p104
      %p106 = scmp.ne.s32.totalorder %s92, %s93
      %p107 = scmp.eq.s32.totalorder %s22, 1
      %p108 = por %p106, %p107
      %p110 = scmp.ne.s32.totalorder %s93, %s109
      %p111 = scmp.eq.s32.totalorder %s22, 0
      %p112 = por %p110, %p111
      %s113 = ssub.s32 %s16, %s23
      %p114 = scmp.eq.s32.totalorder %s113, 0
      %s116 = sadd.s32 %s115, 1
      %s117 = scalar_select %p114, %s115, %s116
      %p120 = pneg %p114
      %p121 = scmp.eq.s32.totalorder %s16, 1
      %p122 = por %p120, %p121
      %p123 = scmp.ne.s32.totalorder %s115, %s118
      %p124 = scmp.eq.s32.totalorder %s16, 0
      %p125 = por %p123, %p124
      %p126 = scmp.ne.s32.totalorder %s115, %s118
      %p127 = scmp.eq.s32.totalorder %s21, 1
      %p128 = por %p126, %p127
      %p129 = scmp.ne.s32.totalorder %s118, %s119
      %p130 = scmp.eq.s32.totalorder %s21, 0
      %p131 = por %p129, %p130
      %p132 = scmp.ne.s32.totalorder %s118, %s119
      %p133 = scmp.eq.s32.totalorder %s22, 1
      %p134 = por %p132, %p133
      %p136 = scmp.ne.s32.totalorder %s119, %s135
      %p137 = scmp.eq.s32.totalorder %s22, 0
      %p138 = por %p136, %p137
      %s139 = ssub.s32 %s16, %s23
      %p140 = scmp.eq.s32.totalorder %s139, 0
      %s142 = sadd.s32 %s141, 1
      %s143 = scalar_select %p140, %s141, %s142
      %p146 = pneg %p140
      %p147 = scmp.eq.s32.totalorder %s16, 1
      %p148 = por %p146, %p147
      %p149 = scmp.ne.s32.totalorder %s141, %s144
      %p150 = scmp.eq.s32.totalorder %s16, 0
      %p151 = por %p149, %p150
      %p152 = scmp.ne.s32.totalorder %s141, %s144
      %p153 = scmp.eq.s32.totalorder %s21, 1
      %p154 = por %p152, %p153
      %p155 = scmp.ne.s32.totalorder %s144, %s145
      %p156 = scmp.eq.s32.totalorder %s21, 0
      %p157 = por %p155, %p156
      %p158 = scmp.ne.s32.totalorder %s144, %s145
      %p159 = scmp.eq.s32.totalorder %s22, 1
      %p160 = por %p158, %p159
      %p162 = scmp.ne.s32.totalorder %s145, %s161
      %p163 = scmp.eq.s32.totalorder %s22, 0
      %p164 = por %p162, %p163
      %p165 = scmp.le.s32.totalorder 1, %s16
      %p166 = scmp.lt.s32.totalorder %s16, 3
      %p167 = pnand %p165, %p166
      %p168 = pneg %p167
      // Predicated region
      $region9: #{edge_loss.1} parent=5 // pred_check
        _
      $region10: #{edge_loss.1} parent=5 // pred_check_branch
        %170 = sbr.rel (%p167) target = $region12
      $region11: #{edge_loss.1} parent=5 // pred_region
        %s171 = ssub.s32 %s16, 1
        // Predicated region
        $region13: #{edge_loss.1} parent=11 // pred_check
          %p172 = pneg %p37
        $region14: #{edge_loss.1} parent=11 // pred_check_branch
          %174 = sbr.rel (%p172) target = $region16
        $region15: #{edge_loss.1} parent=11 // pred_region
          %s176 = ssub.s32 512, 512
          %177 = vsyncadd [#allocation3], %s176
          %s178 = sshll.u32 [#allocation2], 4
          %s179 = int_to_ptr.vmem [resolvable:$true] %s178
          %184 = dma.hbm_to_vmem [thread:$0]  %s0, 512, %s179, [#allocation3], 128, 128, 8
        $region16: #{edge_loss.1} parent=11 // pred_fallthru
          _
        // Predicated region
        $region17: #{edge_loss.1} parent=11 // pred_check
          %p185 = pneg %p58
        $region18: #{edge_loss.1} parent=11 // pred_check_branch
          %187 = sbr.rel (%p185) target = $region20
        $region19: #{edge_loss.1} parent=11 // pred_region
          %s189 = ssub.s32 512, 512
          %190 = vsyncadd [#allocation5], %s189
          %s191 = sshll.u32 [#allocation4], 4
          %s192 = int_to_ptr.vmem [resolvable:$true] %s191
          %197 = dma.hbm_to_vmem [thread:$0]  %s1, 512, %s192, [#allocation5], 128, 128, 8
        $region20: #{edge_loss.1} parent=11 // pred_fallthru
          _
        // Predicated region
        $region21: #{edge_loss.1} parent=11 // pred_check
          %p198 = pneg %p79
        $region22: #{edge_loss.1} parent=11 // pred_check_branch
          %200 = sbr.rel (%p198) target = $region24
        $region23: #{edge_loss.1} parent=11 // pred_region
          %s202 = ssub.s32 512, 512
          %203 = vsyncadd [#allocation5], %s202
          %s204 = sshll.u32 [#allocation6], 4
          %s205 = int_to_ptr.vmem [resolvable:$true] %s204
          %210 = dma.hbm_to_vmem [thread:$0]  %s2, 512, %s205, [#allocation5], 128, 128, 8
        $region24: #{edge_loss.1} parent=11 // pred_fallthru
          _
      $region12: #{edge_loss.1} parent=5 // pred_fallthru
        _
      %p211 = scmp.lt.s32.totalorder %s16, 2
      // Predicated region
      $region25: #{edge_loss.1} parent=5 // pred_check
        %p212 = pneg %p211
      $region26: #{edge_loss.1} parent=5 // pred_check_branch
        %214 = sbr.rel (%p212) target = $region28
      $region27: #{edge_loss.1} parent=5 // pred_region
        // Predicated region
        $region29: #{edge_loss.1} parent=27 // pred_check
          %p215 = pneg %p99
        $region30: #{edge_loss.1} parent=27 // pred_check_branch
          %217 = sbr.rel (%p215) target = $region32
        $region31: #{edge_loss.1} parent=27 // pred_region
          %s218 = sand.u32 %s16, 1
          %s219 = scalar_lea.sflag [#allocation8], %s218
          %s220 = sand.u32 %s89, 1
          %s221 = smul.addr %s220, 96
          %s222 = scalar_lea.vmem [#allocation7], %s221
          %s223 = smul.u32 3, %s16
          %s225 = ssub.s32 1536, 1536
          %226 = vsyncadd %s219, %s225
          %s227 = smul.addr %s223, 4
          %s228 = smul.addr %s227, 128
          %s229 = scalar_lea.hbm %s3, %s228
          %s230 = sshll.u32 %s222, 4
          %s231 = int_to_ptr.vmem [resolvable:$true] %s230
          %236 = dma.hbm_to_vmem [thread:$0]  %s229, 1536, %s231, %s219, 128, 128, 8
        $region32: #{edge_loss.1} parent=27 // pred_fallthru
          _
        // Predicated region
        $region33: #{edge_loss.1} parent=27 // pred_check
          %p237 = pneg %p125
        $region34: #{edge_loss.1} parent=27 // pred_check_branch
          %239 = sbr.rel (%p237) target = $region36
        $region35: #{edge_loss.1} parent=27 // pred_region
          %s240 = sand.u32 %s16, 1
          %s241 = scalar_lea.sflag [#allocation8], %s240
          %s242 = sand.u32 %s115, 1
          %s243 = smul.addr %s242, 96
          %s244 = scalar_lea.vmem [#allocation9], %s243
          %s245 = smul.u32 3, %s16
          %s247 = ssub.s32 1536, 1536
          %248 = vsyncadd %s241, %s247
          %s249 = smul.addr %s245, 4
          %s250 = smul.addr %s249, 128
          %s251 = scalar_lea.hbm %s4, %s250
          %s252 = sshll.u32 %s244, 4
          %s253 = int_to_ptr.vmem [resolvable:$true] %s252
          %258 = dma.hbm_to_vmem [thread:$0]  %s251, 1536, %s253, %s241, 128, 128, 8
        $region36: #{edge_loss.1} parent=27 // pred_fallthru
          _
      $region28: #{edge_loss.1} parent=5 // pred_fallthru
        _
      %p259 = scmp.le.s32.totalorder 1, %s16
      %p260 = scmp.lt.s32.totalorder %s16, 3
      %p261 = pnand %p259, %p260
      %p262 = pneg %p261
      // Predicated region
      $region37: #{edge_loss.1} parent=5 // pred_check
        _
      $region38: #{edge_loss.1} parent=5 // pred_check_branch
        %264 = sbr.rel (%p261) target = $region40
      $region39: #{edge_loss.1} parent=5 // pred_region
        %s265 = ssub.s32 %s16, 1
        // Predicated region
        $region41: #{edge_loss.1} parent=39 // pred_check
          %p266 = pneg %p37
        $region42: #{edge_loss.1} parent=39 // pred_check_branch
          %268 = sbr.rel (%p266) target = $region44
        $region43: #{edge_loss.1} parent=39 // pred_region
          %269 = dma.done [#allocation3], 512
        $region44: #{edge_loss.1} parent=39 // pred_fallthru
          _
        // Predicated region
        $region45: #{edge_loss.1} parent=39 // pred_check
          %p270 = pneg %p58
        $region46: #{edge_loss.1} parent=39 // pred_check_branch
          %272 = sbr.rel (%p270) target = $region48
        $region47: #{edge_loss.1} parent=39 // pred_region
          %273 = dma.done [#allocation5], 512
        $region48: #{edge_loss.1} parent=39 // pred_fallthru
          _
        // Predicated region
        $region49: #{edge_loss.1} parent=39 // pred_check
          %p274 = pneg %p79
        $region50: #{edge_loss.1} parent=39 // pred_check_branch
          %276 = sbr.rel (%p274) target = $region52
        $region51: #{edge_loss.1} parent=39 // pred_region
          %277 = dma.done [#allocation5], 512
        $region52: #{edge_loss.1} parent=39 // pred_fallthru
          _
        %s278 = sand.u32 %s21, 1
        %s279 = scalar_lea.sflag [#allocation8], %s278
        %s280 = sand.u32 %s92, 1
        %s281 = smul.addr %s280, 96
        %s282 = scalar_lea.vmem [#allocation7], %s281
        // Predicated region
        $region53: #{edge_loss.1} parent=39 // pred_check
          %p283 = pneg %p105
        $region54: #{edge_loss.1} parent=39 // pred_check_branch
          %285 = sbr.rel (%p283) target = $region56
        $region55: #{edge_loss.1} parent=39 // pred_region
          %286 = dma.done %s279, 1536
        $region56: #{edge_loss.1} parent=39 // pred_fallthru
          _
        %s287 = sand.u32 %s21, 1
        %s288 = scalar_lea.sflag [#allocation8], %s287
        %s289 = sand.u32 %s118, 1
        %s290 = smul.addr %s289, 96
        %s291 = scalar_lea.vmem [#allocation9], %s290
        // Predicated region
        $region57: #{edge_loss.1} parent=39 // pred_check
          %p292 = pneg %p131
        $region58: #{edge_loss.1} parent=39 // pred_check_branch
          %294 = sbr.rel (%p292) target = $region60
        $region59: #{edge_loss.1} parent=39 // pred_region
          %295 = dma.done %s288, 1536
        $region60: #{edge_loss.1} parent=39 // pred_fallthru
          _
        %p296 = pneg %p37
        %p297 = pneg %p34
        %p298 = pneg %p58
        %p299 = pneg %p55
        %p300 = pneg %p79
        %p301 = pneg %p76
        %s302 = sand.u32 %s21, 1
        %s303 = scalar_lea.sflag [#allocation8], %s302
        %s304 = sand.u32 %s92, 1
        %s305 = smul.addr %s304, 96
        %s306 = scalar_lea.vmem [#allocation7], %s305
        %p307 = pneg %p105
        %p308 = pneg %p102
        %s309 = sand.u32 %s21, 1
        %s310 = scalar_lea.sflag [#allocation8], %s309
        %s311 = sand.u32 %s118, 1
        %s312 = smul.addr %s311, 96
        %s313 = scalar_lea.vmem [#allocation9], %s312
        %p314 = pneg %p131
        %p315 = pneg %p128
        %p316 = pneg %p157
        %p317 = pneg %p154
        %p318 = scmp.lt.s32.totalorder %s21, 1
        %s319 = scalar_select %p318, %s21, 1
        %s320 = smul.addr %s319, 4
        %s321 = smul.addr %s320, 8
        %s322 = scalar_lea.vmem %s5, %s321
        %s323 = smul.u32 3, %s21
        %s324 = smul.u32 3, %s21
        %p325 = scmp.lt.s32.totalorder %s21, 1
        %s326 = scalar_select %p325, %s21, 1
        %s327 = smul.addr %s326, 4
        %s328 = smul.addr %s327, 8
        %s329 = scalar_lea.vmem %s5, %s328
        %v330 = vld [vmem:[#allocation2] sm:$0xff]
        %v331 = vld [vmem:[#allocation2 + $0x8] sm:$0xff]
        %v332 = vld [vmem:[#allocation2 + $0x10] sm:$0xff]
        %v333 = vld [vmem:[#allocation2 + $0x18] sm:$0xff]
        %v334 = vld [vmem:[#allocation4] sm:$0xff]
        %v335 = vld [vmem:[#allocation4 + $0x8] sm:$0xff]
        %v336 = vld [vmem:[#allocation4 + $0x10] sm:$0xff]
        %v337 = vld [vmem:[#allocation4 + $0x18] sm:$0xff]
        %v338 = vld [vmem:[#allocation6] sm:$0xff]
        %v339 = vld [vmem:[#allocation6 + $0x8] sm:$0xff]
        %v340 = vld [vmem:[#allocation6 + $0x10] sm:$0xff]
        %v341 = vld [vmem:[#allocation6 + $0x18] sm:$0xff]
        %vm342 = vcmask 261120
        %343 = vst.msk [vmem:[%s329] sm:$0xff] %vm342, 0.0
        %344 = vst.msk [vmem:[%s329 + $0x8] sm:$0xff] %vm342, 0.0
        %345 = vst.msk [vmem:[%s329 + $0x10] sm:$0xff] %vm342, 0.0
        %346 = vst.msk [vmem:[%s329 + $0x18] sm:$0xff] %vm342, 0.0
        loop: start=0, step=1, limit=3
        $region61: #{edge_loss.1} parent=39 // loop_pre_header
          _
        $region62: #{edge_loss.1} parent=39 // loop_header
          %s348 = sphi 0, %s352
          %p349 = scmp.ge.s32.totalorder %s348, 3
        $region63: #{edge_loss.1} parent=39 // loop_header_branch
          %351 = sbr.rel (%p349) target = $region67
        $region64: #{edge_loss.1} parent=39 // loop_body
          %s353 = smul.u32 %s348, 32
          %s354 = scalar_lea.vmem %s282, %s353 [#allocation7]
          %v355 = vld [vmem:[%s354] sm:$0xff]
          %v356 = vld [vmem:[%s354 + $0x8] sm:$0xff]
          %v357 = vld [vmem:[%s354 + $0x10] sm:$0xff]
          %v358 = vld [vmem:[%s354 + $0x18] sm:$0xff]
          %v360 = vsel %vm342, %v355, 0
          %v363 = vsel %vm342, %v356, 0
          %v366 = vsel %vm342, %v357, 0
          %v369 = vsel %vm342, %v358, 0
          %371 = vmatprep.subr.mxu0 0.0
          %372 = vmatpush1.msra.mxu0 0.0
          %373 = vmatprep.subr.mxu0 0.0
          %374 = vmatpush1.msra.mxu0 0.0
          %375 = vmatprep.subr.mxu0 0.0
          %376 = vmatpush1.msra.mxu0 0.0
          %377 = vmatprep.subr.mxu0 0.0
          %378 = vmatpush1.msra.mxu0 0.0
          %379 = vmatprep.subr.mxu0 0.0
          %380 = vmatpush1.msra.mxu0 0.0
          %381 = vmatprep.subr.mxu0 0.0
          %382 = vmatpush1.msra.mxu0 0.0
          %383 = vmatprep.subr.mxu0 0.0
          %384 = vmatpush1.msra.mxu0 0.0
          %385 = vmatprep.subr.mxu0 0.0
          %386 = vmatpush1.msra.mxu0 0.0
          %387 = vmatprep.subr.mxu0 0.0
          %388 = vmatpush1.msra.mxu0 0.0
          %389 = vmatprep.subr.mxu0 0.0
          %390 = vmatpush1.msra.mxu0 0.0
          %391 = vmatprep.subr.mxu0 0.0
          %392 = vmatpush1.msra.mxu0 0.0
          %393 = vmatprep.subr.mxu0 0.0
          %394 = vmatpush1.msra.mxu0 0.0
          %395 = vmatprep.subr.mxu0 0.0
          %396 = vmatpush1.msra.mxu0 %v337
          %397 = vmatprep.subr.mxu0 0.0
          %398 = vmatpush1.msra.mxu0 %v336
          %399 = vmatprep.subr.mxu0 0.0
          %400 = vmatpush1.msra.mxu0 %v335
          %401 = vmatprep.subr.mxu0 0.0
          %402 = vmatpush1.msra.mxu0 %v334
          %403 = vmatprep.subr.mxu0 0.0
          %404 = vmatpush2.msra.mxu0 0.0
          %405 = vmatprep.subr.mxu0 0.0
          %406 = vmatpush2.msra.mxu0 0.0
          %407 = vmatprep.subr.mxu0 0.0
          %408 = vmatpush2.msra.mxu0 0.0
          %409 = vmatprep.subr.mxu0 0.0
          %410 = vmatpush2.msra.mxu0 0.0
          %411 = vmatprep.subr.mxu0 0.0
          %412 = vmatpush2.msra.mxu0 0.0
          %413 = vmatprep.subr.mxu0 0.0
          %414 = vmatpush2.msra.mxu0 0.0
          %415 = vmatprep.subr.mxu0 0.0
          %416 = vmatpush2.msra.mxu0 0.0
          %417 = vmatprep.subr.mxu0 0.0
          %418 = vmatpush2.msra.mxu0 0.0
          %419 = vmatprep.subr.mxu0 0.0
          %420 = vmatpush2.msra.mxu0 0.0
          %421 = vmatprep.subr.mxu0 0.0
          %422 = vmatpush2.msra.mxu0 0.0
          %423 = vmatprep.subr.mxu0 0.0
          %424 = vmatpush2.msra.mxu0 0.0
          %425 = vmatprep.subr.mxu0 0.0
          %426 = vmatpush2.msra.mxu0 0.0
          %427 = vmatprep.subr.mxu0 0.0
          %428 = vmatpush2.msra.mxu0 0.0
          %429 = vmatprep.subr.mxu0 0.0
          %430 = vmatpush2.msra.mxu0 0.0
          %431 = vmatprep.subr.mxu0 0.0
          %432 = vmatpush2.msra.mxu0 0.0
          %433 = vmatprep.subr.mxu0 0.0
          %434 = vmatpush2.msra.mxu0 0.0
          %435 = vmatprep.mubr.f32.mxu0 0.0
          %436 = vmatmul.mubr.f32.gmra.mxu0 %v360
          %v437 = vpop.f32.mrf.mxu0
          %v438 = vadd.f32 0.0, %v437
          %v439 = vpop.f32.mrf.mxu0
          %440 = vmatprep.mubr.f32.mxu0 0.0
          %441 = vmatmul.mubr.f32.gmra.mxu0 %v363
          %v442 = vpop.f32.mrf.mxu0
          %v443 = vadd.f32 0.0, %v442
          %v444 = vpop.f32.mrf.mxu0
          %445 = vmatprep.mubr.f32.mxu0 0.0
          %446 = vmatmul.mubr.f32.gmra.mxu0 %v366
          %v447 = vpop.f32.mrf.mxu0
          %v448 = vadd.f32 0.0, %v447
          %v449 = vpop.f32.mrf.mxu0
          %450 = vmatprep.mubr.f32.mxu0 0.0
          %451 = vmatmul.mubr.f32.gmra.mxu0 %v369
          %v452 = vpop.f32.mrf.mxu0
          %v453 = vadd.f32 0.0, %v452
          %v454 = vpop.f32.mrf.mxu0
          %455 = vdwg.mxu0
          %v457 = vsel %vm342, %v330, 0
          %v460 = vsel %vm342, %v331, 0
          %v463 = vsel %vm342, %v332, 0
          %v466 = vsel %vm342, %v333, 0
          %468 = vmatprep.subr.mxu0 0.0
          %469 = vmatpush1.msra.mxu0 0.0
          %470 = vmatprep.subr.mxu0 0.0
          %471 = vmatpush1.msra.mxu0 0.0
          %472 = vmatprep.subr.mxu0 0.0
          %473 = vmatpush1.msra.mxu0 0.0
          %474 = vmatprep.subr.mxu0 0.0
          %475 = vmatpush1.msra.mxu0 0.0
          %476 = vmatprep.subr.mxu0 0.0
          %477 = vmatpush1.msra.mxu0 0.0
          %478 = vmatprep.subr.mxu0 0.0
          %479 = vmatpush1.msra.mxu0 0.0
          %480 = vmatprep.subr.mxu0 0.0
          %481 = vmatpush1.msra.mxu0 0.0
          %482 = vmatprep.subr.mxu0 0.0
          %483 = vmatpush1.msra.mxu0 0.0
          %484 = vmatprep.subr.mxu0 0.0
          %485 = vmatpush1.msra.mxu0 0.0
          %486 = vmatprep.subr.mxu0 0.0
          %487 = vmatpush1.msra.mxu0 0.0
          %488 = vmatprep.subr.mxu0 0.0
          %489 = vmatpush1.msra.mxu0 0.0
          %490 = vmatprep.subr.mxu0 0.0
          %491 = vmatpush1.msra.mxu0 0.0
          %492 = vmatprep.subr.mxu0 0.0
          %493 = vmatpush1.msra.mxu0 %v453
          %494 = vmatprep.subr.mxu0 0.0
          %495 = vmatpush1.msra.mxu0 %v448
          %496 = vmatprep.subr.mxu0 0.0
          %497 = vmatpush1.msra.mxu0 %v443
          %498 = vmatprep.subr.mxu0 0.0
          %499 = vmatpush1.msra.mxu0 %v438
          %500 = vmatprep.subr.mxu0 0.0
          %501 = vmatpush2.msra.mxu0 0.0
          %502 = vmatprep.subr.mxu0 0.0
          %503 = vmatpush2.msra.mxu0 0.0
          %504 = vmatprep.subr.mxu0 0.0
          %505 = vmatpush2.msra.mxu0 0.0
          %506 = vmatprep.subr.mxu0 0.0
          %507 = vmatpush2.msra.mxu0 0.0
          %508 = vmatprep.subr.mxu0 0.0
          %509 = vmatpush2.msra.mxu0 0.0
          %510 = vmatprep.subr.mxu0 0.0
          %511 = vmatpush2.msra.mxu0 0.0
          %512 = vmatprep.subr.mxu0 0.0
          %513 = vmatpush2.msra.mxu0 0.0
          %514 = vmatprep.subr.mxu0 0.0
          %515 = vmatpush2.msra.mxu0 0.0
          %516 = vmatprep.subr.mxu0 0.0
          %517 = vmatpush2.msra.mxu0 0.0
          %518 = vmatprep.subr.mxu0 0.0
          %519 = vmatpush2.msra.mxu0 0.0
          %520 = vmatprep.subr.mxu0 0.0
          %521 = vmatpush2.msra.mxu0 0.0
          %522 = vmatprep.subr.mxu0 0.0
          %523 = vmatpush2.msra.mxu0 0.0
          %524 = vmatprep.subr.mxu0 0.0
          %525 = vmatpush2.msra.mxu0 0.0
          %526 = vmatprep.subr.mxu0 0.0
          %527 = vmatpush2.msra.mxu0 0.0
          %528 = vmatprep.subr.mxu0 0.0
          %529 = vmatpush2.msra.mxu0 0.0
          %530 = vmatprep.subr.mxu0 0.0
          %531 = vmatpush2.msra.mxu0 0.0
          %532 = vmatprep.mubr.f32.mxu0 0.0
          %533 = vmatmul.mubr.f32.gmra.mxu0 %v457
          %v534 = vpop.f32.mrf.mxu0
          %v535 = vadd.f32 0.0, %v534
          %v536 = vpop.f32.mrf.mxu0
          %537 = vmatprep.mubr.f32.mxu0 0.0
          %538 = vmatmul.mubr.f32.gmra.mxu0 %v460
          %v539 = vpop.f32.mrf.mxu0
          %v540 = vadd.f32 0.0, %v539
          %v541 = vpop.f32.mrf.mxu0
          %542 = vmatprep.mubr.f32.mxu0 0.0
          %543 = vmatmul.mubr.f32.gmra.mxu0 %v463
          %v544 = vpop.f32.mrf.mxu0
          %v545 = vadd.f32 0.0, %v544
          %v546 = vpop.f32.mrf.mxu0
          %547 = vmatprep.mubr.f32.mxu0 0.0
          %548 = vmatmul.mubr.f32.gmra.mxu0 %v466
          %v549 = vpop.f32.mrf.mxu0
          %v550 = vadd.f32 0.0, %v549
          %v551 = vpop.f32.mrf.mxu0
          %552 = vdwg.mxu0
          %v553 = vmul.f32 %v338, %v535
          %v554 = vmul.f32 %v339, %v540
          %v555 = vmul.f32 %v340, %v545
          %v556 = vmul.f32 %v341, %v550
          %v558 = vsel %vm342, %v553, 0
          %v561 = vsel %vm342, %v554, 0
          %v564 = vsel %vm342, %v555, 0
          %v567 = vsel %vm342, %v556, 0
          %569 = vmatprep.subr.mxu0 0.0
          %570 = vmatpush1.msra.mxu0 0.0
          %571 = vmatprep.subr.mxu0 0.0
          %572 = vmatpush1.msra.mxu0 0.0
          %573 = vmatprep.subr.mxu0 0.0
          %574 = vmatpush1.msra.mxu0 0.0
          %575 = vmatprep.subr.mxu0 0.0
          %576 = vmatpush1.msra.mxu0 0.0
          %577 = vmatprep.subr.mxu0 0.0
          %578 = vmatpush1.msra.mxu0 0.0
          %579 = vmatprep.subr.mxu0 0.0
          %580 = vmatpush1.msra.mxu0 0.0
          %581 = vmatprep.subr.mxu0 0.0
          %582 = vmatpush1.msra.mxu0 0.0
          %583 = vmatprep.subr.mxu0 0.0
          %584 = vmatpush1.msra.mxu0 0.0
          %585 = vmatprep.subr.mxu0 0.0
          %586 = vmatpush1.msra.mxu0 0.0
          %587 = vmatprep.subr.mxu0 0.0
          %588 = vmatpush1.msra.mxu0 0.0
          %589 = vmatprep.subr.mxu0 0.0
          %590 = vmatpush1.msra.mxu0 0.0
          %591 = vmatprep.subr.mxu0 0.0
          %592 = vmatpush1.msra.mxu0 0.0
          %593 = vmatprep.subr.mxu0 0.0
          %594 = vmatpush1.msra.mxu0 %v337
          %595 = vmatprep.subr.mxu0 0.0
          %596 = vmatpush1.msra.mxu0 %v336
          %597 = vmatprep.subr.mxu0 0.0
          %598 = vmatpush1.msra.mxu0 %v335
          %599 = vmatprep.subr.mxu0 0.0
          %600 = vmatpush1.msra.mxu0 %v334
          %601 = vmatprep.subr.mxu0 0.0
          %602 = vmatpush2.msra.mxu0 0.0
          %603 = vmatprep.subr.mxu0 0.0
          %604 = vmatpush2.msra.mxu0 0.0
          %605 = vmatprep.subr.mxu0 0.0
          %606 = vmatpush2.msra.mxu0 0.0
          %607 = vmatprep.subr.mxu0 0.0
          %608 = vmatpush2.msra.mxu0 0.0
          %609 = vmatprep.subr.mxu0 0.0
          %610 = vmatpush2.msra.mxu0 0.0
          %611 = vmatprep.subr.mxu0 0.0
          %612 = vmatpush2.msra.mxu0 0.0
          %613 = vmatprep.subr.mxu0 0.0
          %614 = vmatpush2.msra.mxu0 0.0
          %615 = vmatprep.subr.mxu0 0.0
          %616 = vmatpush2.msra.mxu0 0.0
          %617 = vmatprep.subr.mxu0 0.0
          %618 = vmatpush2.msra.mxu0 0.0
          %619 = vmatprep.subr.mxu0 0.0
          %620 = vmatpush2.msra.mxu0 0.0
          %621 = vmatprep.subr.mxu0 0.0
          %622 = vmatpush2.msra.mxu0 0.0
          %623 = vmatprep.subr.mxu0 0.0
          %624 = vmatpush2.msra.mxu0 0.0
          %625 = vmatprep.subr.mxu0 0.0
          %626 = vmatpush2.msra.mxu0 0.0
          %627 = vmatprep.subr.mxu0 0.0
          %628 = vmatpush2.msra.mxu0 0.0
          %629 = vmatprep.subr.mxu0 0.0
          %630 = vmatpush2.msra.mxu0 0.0
          %631 = vmatprep.subr.mxu0 0.0
          %632 = vmatpush2.msra.mxu0 0.0
          %633 = vmatprep.mubr.f32.mxu0 0.0
          %634 = vmatmul.mubr.f32.gmra.mxu0 %v558
          %v635 = vpop.f32.mrf.mxu0
          %v636 = vadd.f32 0.0, %v635
          %v637 = vpop.f32.mrf.mxu0
          %638 = vmatprep.mubr.f32.mxu0 0.0
          %639 = vmatmul.mubr.f32.gmra.mxu0 %v561
          %v640 = vpop.f32.mrf.mxu0
          %v641 = vadd.f32 0.0, %v640
          %v642 = vpop.f32.mrf.mxu0
          %643 = vmatprep.mubr.f32.mxu0 0.0
          %644 = vmatmul.mubr.f32.gmra.mxu0 %v564
          %v645 = vpop.f32.mrf.mxu0
          %v646 = vadd.f32 0.0, %v645
          %v647 = vpop.f32.mrf.mxu0
          %648 = vmatprep.mubr.f32.mxu0 0.0
          %649 = vmatmul.mubr.f32.gmra.mxu0 %v567
          %v650 = vpop.f32.mrf.mxu0
          %v651 = vadd.f32 0.0, %v650
          %v652 = vpop.f32.mrf.mxu0
          %653 = vdwg.mxu0
          %654 = vmatprep.subr.mxu0 0.0
          %655 = vmatpush1.msra.mxu0 0.0
          %656 = vmatprep.subr.mxu0 0.0
          %657 = vmatpush1.msra.mxu0 0.0
          %658 = vmatprep.subr.mxu0 0.0
          %659 = vmatpush1.msra.mxu0 0.0
          %660 = vmatprep.subr.mxu0 0.0
          %661 = vmatpush1.msra.mxu0 0.0
          %662 = vmatprep.subr.mxu0 0.0
          %663 = vmatpush1.msra.mxu0 0.0
          %664 = vmatprep.subr.mxu0 0.0
          %665 = vmatpush1.msra.mxu0 0.0
          %666 = vmatprep.subr.mxu0 0.0
          %667 = vmatpush1.msra.mxu0 0.0
          %668 = vmatprep.subr.mxu0 0.0
          %669 = vmatpush1.msra.mxu0 0.0
          %670 = vmatprep.subr.mxu0 0.0
          %671 = vmatpush1.msra.mxu0 0.0
          %672 = vmatprep.subr.mxu0 0.0
          %673 = vmatpush1.msra.mxu0 0.0
          %674 = vmatprep.subr.mxu0 0.0
          %675 = vmatpush1.msra.mxu0 0.0
          %676 = vmatprep.subr.mxu0 0.0
          %677 = vmatpush1.msra.mxu0 0.0
          %678 = vmatprep.subr.mxu0 0.0
          %679 = vmatpush1.msra.mxu0 %v651
          %680 = vmatprep.subr.mxu0 0.0
          %681 = vmatpush1.msra.mxu0 %v646
          %682 = vmatprep.subr.mxu0 0.0
          %683 = vmatpush1.msra.mxu0 %v641
          %684 = vmatprep.subr.mxu0 0.0
          %685 = vmatpush1.msra.mxu0 %v636
          %686 = vmatprep.subr.mxu0 0.0
          %687 = vmatpush2.msra.mxu0 0.0
          %688 = vmatprep.subr.mxu0 0.0
          %689 = vmatpush2.msra.mxu0 0.0
          %690 = vmatprep.subr.mxu0 0.0
          %691 = vmatpush2.msra.mxu0 0.0
          %692 = vmatprep.subr.mxu0 0.0
          %693 = vmatpush2.msra.mxu0 0.0
          %694 = vmatprep.subr.mxu0 0.0
          %695 = vmatpush2.msra.mxu0 0.0
          %696 = vmatprep.subr.mxu0 0.0
          %697 = vmatpush2.msra.mxu0 0.0
          %698 = vmatprep.subr.mxu0 0.0
          %699 = vmatpush2.msra.mxu0 0.0
          %700 = vmatprep.subr.mxu0 0.0
          %701 = vmatpush2.msra.mxu0 0.0
          %702 = vmatprep.subr.mxu0 0.0
          %703 = vmatpush2.msra.mxu0 0.0
          %704 = vmatprep.subr.mxu0 0.0
          %705 = vmatpush2.msra.mxu0 0.0
          %706 = vmatprep.subr.mxu0 0.0
          %707 = vmatpush2.msra.mxu0 0.0
          %708 = vmatprep.subr.mxu0 0.0
          %709 = vmatpush2.msra.mxu0 0.0
          %710 = vmatprep.subr.mxu0 0.0
          %711 = vmatpush2.msra.mxu0 0.0
          %712 = vmatprep.subr.mxu0 0.0
          %713 = vmatpush2.msra.mxu0 0.0
          %714 = vmatprep.subr.mxu0 0.0
          %715 = vmatpush2.msra.mxu0 0.0
          %716 = vmatprep.subr.mxu0 0.0
          %717 = vmatpush2.msra.mxu0 0.0
          %718 = vmatprep.mubr.f32.mxu0 0.0
          %719 = vmatmul.mubr.f32.gmra.mxu0 %v457
          %v720 = vpop.f32.mrf.mxu0
          %v721 = vadd.f32 0.0, %v720
          %v722 = vpop.f32.mrf.mxu0
          %723 = vmatprep.mubr.f32.mxu0 0.0
          %724 = vmatmul.mubr.f32.gmra.mxu0 %v460
          %v725 = vpop.f32.mrf.mxu0
          %v726 = vadd.f32 0.0, %v725
          %v727 = vpop.f32.mrf.mxu0
          %728 = vmatprep.mubr.f32.mxu0 0.0
          %729 = vmatmul.mubr.f32.gmra.mxu0 %v463
          %v730 = vpop.f32.mrf.mxu0
          %v731 = vadd.f32 0.0, %v730
          %v732 = vpop.f32.mrf.mxu0
          %733 = vmatprep.mubr.f32.mxu0 0.0
          %734 = vmatmul.mubr.f32.gmra.mxu0 %v466
          %v735 = vpop.f32.mrf.mxu0
          %v736 = vadd.f32 0.0, %v735
          %v737 = vpop.f32.mrf.mxu0
          %738 = vdwg.mxu0
          %v739 = vsub.f32 %v355, %v721
          %v740 = vsub.f32 %v356, %v726
          %v741 = vsub.f32 %v357, %v731
          %v742 = vsub.f32 %v358, %v736
          %s743 = scalar_lea.vmem %s291, %s353 [#allocation9]
          %v744 = vld [vmem:[%s743] sm:$0xff]
          %v745 = vld [vmem:[%s743 + $0x8] sm:$0xff]
          %v746 = vld [vmem:[%s743 + $0x10] sm:$0xff]
          %v747 = vld [vmem:[%s743 + $0x18] sm:$0xff]
          %v749 = vsel %vm342, %v744, 0
          %v752 = vsel %vm342, %v745, 0
          %v755 = vsel %vm342, %v746, 0
          %v758 = vsel %vm342, %v747, 0
          %760 = vmatprep.subr.mxu0 0.0
          %761 = vmatpush1.msra.mxu0 0.0
          %762 = vmatprep.subr.mxu0 0.0
          %763 = vmatpush1.msra.mxu0 0.0
          %764 = vmatprep.subr.mxu0 0.0
          %765 = vmatpush1.msra.mxu0 0.0
          %766 = vmatprep.subr.mxu0 0.0
          %767 = vmatpush1.msra.mxu0 0.0
          %768 = vmatprep.subr.mxu0 0.0
          %769 = vmatpush1.msra.mxu0 0.0
          %770 = vmatprep.subr.mxu0 0.0
          %771 = vmatpush1.msra.mxu0 0.0
          %772 = vmatprep.subr.mxu0 0.0
          %773 = vmatpush1.msra.mxu0 0.0
          %774 = vmatprep.subr.mxu0 0.0
          %775 = vmatpush1.msra.mxu0 0.0
          %776 = vmatprep.subr.mxu0 0.0
          %777 = vmatpush1.msra.mxu0 0.0
          %778 = vmatprep.subr.mxu0 0.0
          %779 = vmatpush1.msra.mxu0 0.0
          %780 = vmatprep.subr.mxu0 0.0
          %781 = vmatpush1.msra.mxu0 0.0
          %782 = vmatprep.subr.mxu0 0.0
          %783 = vmatpush1.msra.mxu0 0.0
          %784 = vmatprep.subr.mxu0 0.0
          %785 = vmatpush1.msra.mxu0 %v337
          %786 = vmatprep.subr.mxu0 0.0
          %787 = vmatpush1.msra.mxu0 %v336
          %788 = vmatprep.subr.mxu0 0.0
          %789 = vmatpush1.msra.mxu0 %v335
          %790 = vmatprep.subr.mxu0 0.0
          %791 = vmatpush1.msra.mxu0 %v334
          %792 = vmatprep.subr.mxu0 0.0
          %793 = vmatpush2.msra.mxu0 0.0
          %794 = vmatprep.subr.mxu0 0.0
          %795 = vmatpush2.msra.mxu0 0.0
          %796 = vmatprep.subr.mxu0 0.0
          %797 = vmatpush2.msra.mxu0 0.0
          %798 = vmatprep.subr.mxu0 0.0
          %799 = vmatpush2.msra.mxu0 0.0
          %800 = vmatprep.subr.mxu0 0.0
          %801 = vmatpush2.msra.mxu0 0.0
          %802 = vmatprep.subr.mxu0 0.0
          %803 = vmatpush2.msra.mxu0 0.0
          %804 = vmatprep.subr.mxu0 0.0
          %805 = vmatpush2.msra.mxu0 0.0
          %806 = vmatprep.subr.mxu0 0.0
          %807 = vmatpush2.msra.mxu0 0.0
          %808 = vmatprep.subr.mxu0 0.0
          %809 = vmatpush2.msra.mxu0 0.0
          %810 = vmatprep.subr.mxu0 0.0
          %811 = vmatpush2.msra.mxu0 0.0
          %812 = vmatprep.subr.mxu0 0.0
          %813 = vmatpush2.msra.mxu0 0.0
          %814 = vmatprep.subr.mxu0 0.0
          %815 = vmatpush2.msra.mxu0 0.0
          %816 = vmatprep.subr.mxu0 0.0
          %817 = vmatpush2.msra.mxu0 0.0
          %818 = vmatprep.subr.mxu0 0.0
          %819 = vmatpush2.msra.mxu0 0.0
          %820 = vmatprep.subr.mxu0 0.0
          %821 = vmatpush2.msra.mxu0 0.0
          %822 = vmatprep.subr.mxu0 0.0
          %823 = vmatpush2.msra.mxu0 0.0
          %824 = vmatprep.mubr.f32.mxu0 0.0
          %825 = vmatmul.mubr.f32.gmra.mxu0 %v749
          %v826 = vpop.f32.mrf.mxu0
          %v827 = vadd.f32 0.0, %v826
          %v828 = vpop.f32.mrf.mxu0
          %829 = vmatprep.mubr.f32.mxu0 0.0
          %830 = vmatmul.mubr.f32.gmra.mxu0 %v752
          %v831 = vpop.f32.mrf.mxu0
          %v832 = vadd.f32 0.0, %v831
          %v833 = vpop.f32.mrf.mxu0
          %834 = vmatprep.mubr.f32.mxu0 0.0
          %835 = vmatmul.mubr.f32.gmra.mxu0 %v755
          %v836 = vpop.f32.mrf.mxu0
          %v837 = vadd.f32 0.0, %v836
          %v838 = vpop.f32.mrf.mxu0
          %839 = vmatprep.mubr.f32.mxu0 0.0
          %840 = vmatmul.mubr.f32.gmra.mxu0 %v758
          %v841 = vpop.f32.mrf.mxu0
          %v842 = vadd.f32 0.0, %v841
          %v843 = vpop.f32.mrf.mxu0
          %844 = vdwg.mxu0
          %845 = vmatprep.subr.mxu0 0.0
          %846 = vmatpush1.msra.mxu0 0.0
          %847 = vmatprep.subr.mxu0 0.0
          %848 = vmatpush1.msra.mxu0 0.0
          %849 = vmatprep.subr.mxu0 0.0
          %850 = vmatpush1.msra.mxu0 0.0
          %851 = vmatprep.subr.mxu0 0.0
          %852 = vmatpush1.msra.mxu0 0.0
          %853 = vmatprep.subr.mxu0 0.0
          %854 = vmatpush1.msra.mxu0 0.0
          %855 = vmatprep.subr.mxu0 0.0
          %856 = vmatpush1.msra.mxu0 0.0
          %857 = vmatprep.subr.mxu0 0.0
          %858 = vmatpush1.msra.mxu0 0.0
          %859 = vmatprep.subr.mxu0 0.0
          %860 = vmatpush1.msra.mxu0 0.0
          %861 = vmatprep.subr.mxu0 0.0
          %862 = vmatpush1.msra.mxu0 0.0
          %863 = vmatprep.subr.mxu0 0.0
          %864 = vmatpush1.msra.mxu0 0.0
          %865 = vmatprep.subr.mxu0 0.0
          %866 = vmatpush1.msra.mxu0 0.0
          %867 = vmatprep.subr.mxu0 0.0
          %868 = vmatpush1.msra.mxu0 0.0
          %869 = vmatprep.subr.mxu0 0.0
          %870 = vmatpush1.msra.mxu0 %v842
          %871 = vmatprep.subr.mxu0 0.0
          %872 = vmatpush1.msra.mxu0 %v837
          %873 = vmatprep.subr.mxu0 0.0
          %874 = vmatpush1.msra.mxu0 %v832
          %875 = vmatprep.subr.mxu0 0.0
          %876 = vmatpush1.msra.mxu0 %v827
          %877 = vmatprep.subr.mxu0 0.0
          %878 = vmatpush2.msra.mxu0 0.0
          %879 = vmatprep.subr.mxu0 0.0
          %880 = vmatpush2.msra.mxu0 0.0
          %881 = vmatprep.subr.mxu0 0.0
          %882 = vmatpush2.msra.mxu0 0.0
          %883 = vmatprep.subr.mxu0 0.0
          %884 = vmatpush2.msra.mxu0 0.0
          %885 = vmatprep.subr.mxu0 0.0
          %886 = vmatpush2.msra.mxu0 0.0
          %887 = vmatprep.subr.mxu0 0.0
          %888 = vmatpush2.msra.mxu0 0.0
          %889 = vmatprep.subr.mxu0 0.0
          %890 = vmatpush2.msra.mxu0 0.0
          %891 = vmatprep.subr.mxu0 0.0
          %892 = vmatpush2.msra.mxu0 0.0
          %893 = vmatprep.subr.mxu0 0.0
          %894 = vmatpush2.msra.mxu0 0.0
          %895 = vmatprep.subr.mxu0 0.0
          %896 = vmatpush2.msra.mxu0 0.0
          %897 = vmatprep.subr.mxu0 0.0
          %898 = vmatpush2.msra.mxu0 0.0
          %899 = vmatprep.subr.mxu0 0.0
          %900 = vmatpush2.msra.mxu0 0.0
          %901 = vmatprep.subr.mxu0 0.0
          %902 = vmatpush2.msra.mxu0 0.0
          %903 = vmatprep.subr.mxu0 0.0
          %904 = vmatpush2.msra.mxu0 0.0
          %905 = vmatprep.subr.mxu0 0.0
          %906 = vmatpush2.msra.mxu0 0.0
          %907 = vmatprep.subr.mxu0 0.0
          %908 = vmatpush2.msra.mxu0 0.0
          %909 = vmatprep.mubr.f32.mxu0 0.0
          %910 = vmatmul.mubr.f32.gmra.mxu0 %v457
          %v911 = vpop.f32.mrf.mxu0
          %v912 = vadd.f32 0.0, %v911
          %v913 = vpop.f32.mrf.mxu0
          %914 = vmatprep.mubr.f32.mxu0 0.0
          %915 = vmatmul.mubr.f32.gmra.mxu0 %v460
          %v916 = vpop.f32.mrf.mxu0
          %v917 = vadd.f32 0.0, %v916
          %v918 = vpop.f32.mrf.mxu0
          %919 = vmatprep.mubr.f32.mxu0 0.0
          %920 = vmatmul.mubr.f32.gmra.mxu0 %v463
          %v921 = vpop.f32.mrf.mxu0
          %v922 = vadd.f32 0.0, %v921
          %v923 = vpop.f32.mrf.mxu0
          %924 = vmatprep.mubr.f32.mxu0 0.0
          %925 = vmatmul.mubr.f32.gmra.mxu0 %v466
          %v926 = vpop.f32.mrf.mxu0
          %v927 = vadd.f32 0.0, %v926
          %v928 = vpop.f32.mrf.mxu0
          %929 = vdwg.mxu0
          %v930 = vmul.f32 %v338, %v912
          %v931 = vmul.f32 %v339, %v917
          %v932 = vmul.f32 %v340, %v922
          %v933 = vmul.f32 %v341, %v927
          %v935 = vsel %vm342, %v930, 0
          %v938 = vsel %vm342, %v931, 0
          %v941 = vsel %vm342, %v932, 0
          %v944 = vsel %vm342, %v933, 0
          %946 = vmatprep.subr.mxu0 0.0
          %947 = vmatpush1.msra.mxu0 0.0
          %948 = vmatprep.subr.mxu0 0.0
          %949 = vmatpush1.msra.mxu0 0.0
          %950 = vmatprep.subr.mxu0 0.0
          %951 = vmatpush1.msra.mxu0 0.0
          %952 = vmatprep.subr.mxu0 0.0
          %953 = vmatpush1.msra.mxu0 0.0
          %954 = vmatprep.subr.mxu0 0.0
          %955 = vmatpush1.msra.mxu0 0.0
          %956 = vmatprep.subr.mxu0 0.0
          %957 = vmatpush1.msra.mxu0 0.0
          %958 = vmatprep.subr.mxu0 0.0
          %959 = vmatpush1.msra.mxu0 0.0
          %960 = vmatprep.subr.mxu0 0.0
          %961 = vmatpush1.msra.mxu0 0.0
          %962 = vmatprep.subr.mxu0 0.0
          %963 = vmatpush1.msra.mxu0 0.0
          %964 = vmatprep.subr.mxu0 0.0
          %965 = vmatpush1.msra.mxu0 0.0
          %966 = vmatprep.subr.mxu0 0.0
          %967 = vmatpush1.msra.mxu0 0.0
          %968 = vmatprep.subr.mxu0 0.0
          %969 = vmatpush1.msra.mxu0 0.0
          %970 = vmatprep.subr.mxu0 0.0
          %971 = vmatpush1.msra.mxu0 %v337
          %972 = vmatprep.subr.mxu0 0.0
          %973 = vmatpush1.msra.mxu0 %v336
          %974 = vmatprep.subr.mxu0 0.0
          %975 = vmatpush1.msra.mxu0 %v335
          %976 = vmatprep.subr.mxu0 0.0
          %977 = vmatpush1.msra.mxu0 %v334
          %978 = vmatprep.subr.mxu0 0.0
          %979 = vmatpush2.msra.mxu0 0.0
          %980 = vmatprep.subr.mxu0 0.0
          %981 = vmatpush2.msra.mxu0 0.0
          %982 = vmatprep.subr.mxu0 0.0
          %983 = vmatpush2.msra.mxu0 0.0
          %984 = vmatprep.subr.mxu0 0.0
          %985 = vmatpush2.msra.mxu0 0.0
          %986 = vmatprep.subr.mxu0 0.0
          %987 = vmatpush2.msra.mxu0 0.0
          %988 = vmatprep.subr.mxu0 0.0
          %989 = vmatpush2.msra.mxu0 0.0
          %990 = vmatprep.subr.mxu0 0.0
          %991 = vmatpush2.msra.mxu0 0.0
          %992 = vmatprep.subr.mxu0 0.0
          %993 = vmatpush2.msra.mxu0 0.0
          %994 = vmatprep.subr.mxu0 0.0
          %995 = vmatpush2.msra.mxu0 0.0
          %996 = vmatprep.subr.mxu0 0.0
          %997 = vmatpush2.msra.mxu0 0.0
          %998 = vmatprep.subr.mxu0 0.0
          %999 = vmatpush2.msra.mxu0 0.0
          %1000 = vmatprep.subr.mxu0 0.0
          %1001 = vmatpush2.msra.mxu0 0.0
          %1002 = vmatprep.subr.mxu0 0.0
          %1003 = vmatpush2.msra.mxu0 0.0
          %1004 = vmatprep.subr.mxu0 0.0
          %1005 = vmatpush2.msra.mxu0 0.0
          %1006 = vmatprep.subr.mxu0 0.0
          %1007 = vmatpush2.msra.mxu0 0.0
          %1008 = vmatprep.subr.mxu0 0.0
          %1009 = vmatpush2.msra.mxu0 0.0
          %1010 = vmatprep.mubr.f32.mxu0 0.0
          %1011 = vmatmul.mubr.f32.gmra.mxu0 %v935
          %v1012 = vpop.f32.mrf.mxu0
          %v1013 = vadd.f32 0.0, %v1012
          %v1014 = vpop.f32.mrf.mxu0
          %1015 = vmatprep.mubr.f32.mxu0 0.0
          %1016 = vmatmul.mubr.f32.gmra.mxu0 %v938
          %v1017 = vpop.f32.mrf.mxu0
          %v1018 = vadd.f32 0.0, %v1017
          %v1019 = vpop.f32.mrf.mxu0
          %1020 = vmatprep.mubr.f32.mxu0 0.0
          %1021 = vmatmul.mubr.f32.gmra.mxu0 %v941
          %v1022 = vpop.f32.mrf.mxu0
          %v1023 = vadd.f32 0.0, %v1022
          %v1024 = vpop.f32.mrf.mxu0
          %1025 = vmatprep.mubr.f32.mxu0 0.0
          %1026 = vmatmul.mubr.f32.gmra.mxu0 %v944
          %v1027 = vpop.f32.mrf.mxu0
          %v1028 = vadd.f32 0.0, %v1027
          %v1029 = vpop.f32.mrf.mxu0
          %1030 = vdwg.mxu0
          %1031 = vmatprep.subr.mxu0 0.0
          %1032 = vmatpush1.msra.mxu0 0.0
          %1033 = vmatprep.subr.mxu0 0.0
          %1034 = vmatpush1.msra.mxu0 0.0
          %1035 = vmatprep.subr.mxu0 0.0
          %1036 = vmatpush1.msra.mxu0 0.0
          %1037 = vmatprep.subr.mxu0 0.0
          %1038 = vmatpush1.msra.mxu0 0.0
          %1039 = vmatprep.subr.mxu0 0.0
          %1040 = vmatpush1.msra.mxu0 0.0
          %1041 = vmatprep.subr.mxu0 0.0
          %1042 = vmatpush1.msra.mxu0 0.0
          %1043 = vmatprep.subr.mxu0 0.0
          %1044 = vmatpush1.msra.mxu0 0.0
          %1045 = vmatprep.subr.mxu0 0.0
          %1046 = vmatpush1.msra.mxu0 0.0
          %1047 = vmatprep.subr.mxu0 0.0
          %1048 = vmatpush1.msra.mxu0 0.0
          %1049 = vmatprep.subr.mxu0 0.0
          %1050 = vmatpush1.msra.mxu0 0.0
          %1051 = vmatprep.subr.mxu0 0.0
          %1052 = vmatpush1.msra.mxu0 0.0
          %1053 = vmatprep.subr.mxu0 0.0
          %1054 = vmatpush1.msra.mxu0 0.0
          %1055 = vmatprep.subr.mxu0 0.0
          %1056 = vmatpush1.msra.mxu0 %v1028
          %1057 = vmatprep.subr.mxu0 0.0
          %1058 = vmatpush1.msra.mxu0 %v1023
          %1059 = vmatprep.subr.mxu0 0.0
          %1060 = vmatpush1.msra.mxu0 %v1018
          %1061 = vmatprep.subr.mxu0 0.0
          %1062 = vmatpush1.msra.mxu0 %v1013
          %1063 = vmatprep.subr.mxu0 0.0
          %1064 = vmatpush2.msra.mxu0 0.0
          %1065 = vmatprep.subr.mxu0 0.0
          %1066 = vmatpush2.msra.mxu0 0.0
          %1067 = vmatprep.subr.mxu0 0.0
          %1068 = vmatpush2.msra.mxu0 0.0
          %1069 = vmatprep.subr.mxu0 0.0
          %1070 = vmatpush2.msra.mxu0 0.0
          %1071 = vmatprep.subr.mxu0 0.0
          %1072 = vmatpush2.msra.mxu0 0.0
          %1073 = vmatprep.subr.mxu0 0.0
          %1074 = vmatpush2.msra.mxu0 0.0
          %1075 = vmatprep.subr.mxu0 0.0
          %1076 = vmatpush2.msra.mxu0 0.0
          %1077 = vmatprep.subr.mxu0 0.0
          %1078 = vmatpush2.msra.mxu0 0.0
          %1079 = vmatprep.subr.mxu0 0.0
          %1080 = vmatpush2.msra.mxu0 0.0
          %1081 = vmatprep.subr.mxu0 0.0
          %1082 = vmatpush2.msra.mxu0 0.0
          %1083 = vmatprep.subr.mxu0 0.0
          %1084 = vmatpush2.msra.mxu0 0.0
          %1085 = vmatprep.subr.mxu0 0.0
          %1086 = vmatpush2.msra.mxu0 0.0
          %1087 = vmatprep.subr.mxu0 0.0
          %1088 = vmatpush2.msra.mxu0 0.0
          %1089 = vmatprep.subr.mxu0 0.0
          %1090 = vmatpush2.msra.mxu0 0.0
          %1091 = vmatprep.subr.mxu0 0.0
          %1092 = vmatpush2.msra.mxu0 0.0
          %1093 = vmatprep.subr.mxu0 0.0
          %1094 = vmatpush2.msra.mxu0 0.0
          %1095 = vmatprep.mubr.f32.mxu0 0.0
          %1096 = vmatmul.mubr.f32.gmra.mxu0 %v457
          %v1097 = vpop.f32.mrf.mxu0
          %v1098 = vadd.f32 0.0, %v1097
          %v1099 = vpop.f32.mrf.mxu0
          %1100 = vmatprep.mubr.f32.mxu0 0.0
          %1101 = vmatmul.mubr.f32.gmra.mxu0 %v460
          %v1102 = vpop.f32.mrf.mxu0
          %v1103 = vadd.f32 0.0, %v1102
          %v1104 = vpop.f32.mrf.mxu0
          %1105 = vmatprep.mubr.f32.mxu0 0.0
          %1106 = vmatmul.mubr.f32.gmra.mxu0 %v463
          %v1107 = vpop.f32.mrf.mxu0
          %v1108 = vadd.f32 0.0, %v1107
          %v1109 = vpop.f32.mrf.mxu0
          %1110 = vmatprep.mubr.f32.mxu0 0.0
          %1111 = vmatmul.mubr.f32.gmra.mxu0 %v466
          %v1112 = vpop.f32.mrf.mxu0
          %v1113 = vadd.f32 0.0, %v1112
          %v1114 = vpop.f32.mrf.mxu0
          %1115 = vdwg.mxu0
          %v1116 = vsub.f32 %v744, %v1098
          %v1117 = vsub.f32 %v745, %v1103
          %v1118 = vsub.f32 %v746, %v1108
          %v1119 = vsub.f32 %v747, %v1113
          %v1120 = vsub.f32 %v739, %v1116
          %v1121 = vsub.f32 %v740, %v1117
          %v1122 = vsub.f32 %v741, %v1118
          %v1123 = vsub.f32 %v742, %v1119
          %v1124 = vld [vmem:[%s329] sm:$0xff]
          %v1125 = vld [vmem:[%s329 + $0x8] sm:$0xff]
          %v1126 = vld [vmem:[%s329 + $0x10] sm:$0xff]
          %v1127 = vld [vmem:[%s329 + $0x18] sm:$0xff]
          %v1128 = vmul.f32 %v1120, %v1120
          %v1129 = vmul.f32 %v1121, %v1121
          %v1130 = vmul.f32 %v1122, %v1122
          %v1131 = vmul.f32 %v1123, %v1123
          %v1132 = vadd.f32 %v1128, 1e-06
          %v1133 = vadd.f32 %v1129, 1e-06
          %v1134 = vadd.f32 %v1130, 1e-06
          %v1135 = vadd.f32 %v1131, 1e-06
          %v1136 = vrsqrt.pop %v1132
          %v1137 = vmul.f32 %v1132, %v1136
          %vm1138 = vcmp.eq.f32.partialorder %v1132, inf
          %v1139 = vsel %vm1138, %v1132, %v1137
          %vm1140 = vcmp.eq.f32.partialorder %v1132, 0.0
          %v1141 = vand.u32 %v1132, 2147483648
          %v1142 = vsel %vm1140, %v1141, %v1139
          %v1143 = vrsqrt.pop %v1133
          %v1144 = vmul.f32 %v1133, %v1143
          %vm1145 = vcmp.eq.f32.partialorder %v1133, inf
          %v1146 = vsel %vm1145, %v1133, %v1144
          %vm1147 = vcmp.eq.f32.partialorder %v1133, 0.0
          %v1148 = vand.u32 %v1133, 2147483648
          %v1149 = vsel %vm1147, %v1148, %v1146
          %v1150 = vrsqrt.pop %v1134
          %v1151 = vmul.f32 %v1134, %v1150
          %vm1152 = vcmp.eq.f32.partialorder %v1134, inf
          %v1153 = vsel %vm1152, %v1134, %v1151
          %vm1154 = vcmp.eq.f32.partialorder %v1134, 0.0
          %v1155 = vand.u32 %v1134, 2147483648
          %v1156 = vsel %vm1154, %v1155, %v1153
          %v1157 = vrsqrt.pop %v1135
          %v1158 = vmul.f32 %v1135, %v1157
          %vm1159 = vcmp.eq.f32.partialorder %v1135, inf
          %v1160 = vsel %vm1159, %v1135, %v1158
          %vm1161 = vcmp.eq.f32.partialorder %v1135, 0.0
          %v1162 = vand.u32 %v1135, 2147483648
          %v1163 = vsel %vm1161, %v1162, %v1160
          %v1164 = vadd.f32 %v1124, %v1142
          %v1165 = vadd.f32 %v1125, %v1149
          %v1166 = vadd.f32 %v1126, %v1156
          %v1167 = vadd.f32 %v1127, %v1163
          %1168 = vst.msk [vmem:[%s329] sm:$0xff] %vm342, %v1164
          %1169 = vst.msk [vmem:[%s329 + $0x8] sm:$0xff] %vm342, %v1165
          %1170 = vst.msk [vmem:[%s329 + $0x10] sm:$0xff] %vm342, %v1166
          %1171 = vst.msk [vmem:[%s329 + $0x18] sm:$0xff] %vm342, %v1167
        $region65: #{edge_loss.1} parent=39 // loop_footer
          %s352 = sadd.s32 1, %s348
        $region66: #{edge_loss.1} parent=39 // loop_footer_branch
          %347 = sbr.rel target = $region62
        $region67: #{edge_loss.1} parent=39 // loop_exit
          _
        %p1172 = scmp.lt.s32.totalorder %s21, 1
        %s1173 = scalar_select %p1172, %s21, 1
        %s1174 = smul.addr %s1173, 4
        %s1175 = smul.addr %s1174, 8
        %s1176 = scalar_lea.vmem %s5, %s1175
        // Predicated region
        $region68: #{edge_loss.1} parent=39 // pred_check
          %p1177 = pneg %p154
        $region69: #{edge_loss.1} parent=39 // pred_check_branch
          %1179 = sbr.rel (%p1177) target = $region71
        $region70: #{edge_loss.1} parent=39 // pred_region
          _
        $region71: #{edge_loss.1} parent=39 // pred_fallthru
          _
      $region40: #{edge_loss.1} parent=5 // pred_fallthru
        _
      %p1180 = scmp.le.s32.totalorder 2, %s16
      // Predicated region
      $region72: #{edge_loss.1} parent=5 // pred_check
        %p1181 = pneg %p1180
      $region73: #{edge_loss.1} parent=5 // pred_check_branch
        %1183 = sbr.rel (%p1181) target = $region75
      $region74: #{edge_loss.1} parent=5 // pred_region
        %s1184 = ssub.s32 %s16, 2
        // Predicated region
        $region76: #{edge_loss.1} parent=74 // pred_check
          %p1185 = pneg %p160
        $region77: #{edge_loss.1} parent=74 // pred_check_branch
          %1187 = sbr.rel (%p1185) target = $region79
        $region78: #{edge_loss.1} parent=74 // pred_region
          %p1188 = scmp.lt.s32.totalorder %s22, 1
          %s1189 = scalar_select %p1188, %s22, 1
          %s1190 = smul.addr %s1189, 4
          %s1191 = smul.addr %s1190, 8
          %s1192 = scalar_lea.vmem %s5, %s1191
        $region79: #{edge_loss.1} parent=74 // pred_fallthru
          _
      $region75: #{edge_loss.1} parent=5 // pred_fallthru
        _
    $region6: #{edge_loss.1} parent=1 // loop_footer
      %s20 = sadd.s32 1, %s16
    $region7: #{edge_loss.1} parent=1 // loop_footer_branch
      %15 = sbr.rel target = $region3
    $region8: #{edge_loss.1} parent=1 // loop_exit
      _
    %1193 = vsyncpa [#allocation3], 1
    %s1194 = scalar_lea.sflag [#allocation3], 1
    %1195 = vsyncpa %s1194, 1
    %1196 = vsyncpa [#allocation5], 1
    %1197 = vsyncpa [#allocation8], 1
    %s1198 = scalar_lea.sflag [#allocation8], 1
    %1199 = vsyncpa %s1198, 1

</llo_original>
